<compile_context>
chip_gen: v6e
topology: v6e:2x2x1
jax: 0.10.0
libtpu: 0.0.40
codegen_flags: <defaults>
</compile_context>

<pallas_src>
import functools
import numpy as np
import jax
import jax.numpy as jnp
from jax import lax
from jax.experimental import pallas as pl
from jax.experimental.pallas import tpu as pltpu

# ---------------- module hyper-parameters (SparseNet.__init__) -------------
N_CH = 4          # N: number of sparse feature maps
M_SZ = 8          # M: spatial size of the code
K_SZ = 3          # K: conv-transpose kernel size
S_ST = 1          # S: conv-transpose stride
T_NORM = True     # T: normalize conv weights
LMDA = 0.005      # lmda

W_OUT = (M_SZ - 1) * S_ST + (K_SZ - 1) + 1   # conv_out_width (10)
P_DIM = N_CH * M_SZ * M_SZ                   # flattened code size (256)
Q_DIM = M_SZ * M_SZ                          # U output size (64)
WSQ = W_OUT * W_OUT                          # 100
BATCH = 2
B_PAD = 16        # pad batch so the bf16 LHS sublane tile (16,128) is dense
MAX_ITERS = 500   # TODO(synk): PyTorch loops until convergence with no cap; a cap
                  # keeps the in-kernel loop statically bounded.
CHECK_EVERY = 8   # unrolled ISTA steps per chunk / convergence-check interval


# ------------------------------ fused kernel --------------------------------
def sparse_net_kernel(h_ref, c_ref, g_ref, brow_ref, out_ref, r_ref, done_ref,
                      *, lmda, n_chunks, check_every):
    """Full ISTA loop + final prediction inside one kernel.

    h_ref:    (P, P)      bf16, H = 2*lr * G @ G^T
    c_ref:    (B_PAD, P)  f32,  C = 2*lr * (bias_row - img) @ G^T (0 on padded rows)
    g_ref:    (P, Q)      bf16, G = A @ U^T
    brow_ref: (1, Q)      f32,  bias_row = conv_bias * sum_w U[:, w]
    out_ref:  (B_PAD, Q)  f32,  pred = R_final @ G + bias_row
    r_ref:    (B_PAD, P)  f32 VMEM scratch, the ISTA iterate
    done_ref: (1,)        int32 SMEM scratch, convergence flag
    """
    lmda_f = jnp.float32(lmda)

    def soft_thr(x):
        # relu(x - lmda) - relu(-x - lmda)
        return jnp.maximum(x - lmda_f, 0.0) - jnp.maximum(-x - lmda_f, 0.0)

    # R starts at 0 in PyTorch; the first ISTA step from zeros is just soft_thr(-C),
    # so seed the iterate there and skip the wasted all-zeros matmul.
    r_ref[...] = soft_thr(-c_ref[...])
    done_ref[0] = jnp.int32(0)

    @pl.loop(0, n_chunks)
    def _chunk(_):
        @pl.when(done_ref[0] == 0)
        def _run():
            c = c_ref[...]                                   # (B_PAD, P) f32

            def ista_step(r):
                # One MXU matmul per step: bf16 operands (no multi-pass f32 matmul),
                # H streamed directly from VMEM (never materialized into vregs),
                # f32 accumulation and f32 elementwise math.
                rh = jnp.dot(r.astype(jnp.bfloat16), h_ref[...],
                             preferred_element_type=jnp.float32)
                return soft_thr(r - (rh + c))

            r = r_ref[...]
            r_prev = r
            for _ in range(check_every):      # unrolled: scheduler overlaps steps
                r_prev = r
                r = ista_step(r_prev)

            # Convergence test (PyTorch: ||R_t - R_{t-1}|| / ||R_{t-1}|| < 0.01),
            # in squared form (no sqrt / divide), evaluated once per chunk only.
            diff = r - r_prev
            dsq = jnp.sum(diff * diff)
            osq = jnp.sum(r_prev * r_prev)
            # TODO(synk): PyTorch exit(1)s on the 0/0 (all-zero R) case; here that
            # case simply freezes R (same behavior as the previous NaN-freeze).
            converged = jnp.logical_or(
                dsq < jnp.float32(1e-4) * osq,
                jnp.logical_and(osq == jnp.float32(0.0), dsq == jnp.float32(0.0)))
            r_ref[...] = r
            done_ref[0] = jnp.where(converged, jnp.int32(1), jnp.int32(0))

    # forward() return value: pred = U(conv_trans(R).reshape(B, -1)) = R @ G + b_row
    out_ref[...] = (jnp.dot(r_ref[...].astype(jnp.bfloat16), g_ref[...],
                            preferred_element_type=jnp.float32)
                    + brow_ref[...])


# --------------------------- pallas_call wrapper -----------------------------
def make_sparse_net_forward(lmda, max_iters, check_every):
    n_chunks = int(pl.cdiv(int(max_iters), int(check_every)))
    kernel = functools.partial(sparse_net_kernel, lmda=float(lmda),
                               n_chunks=n_chunks, check_every=int(check_every))
    vmem = pl.BlockSpec(memory_space=pltpu.MemorySpace.VMEM)
    return pl.pallas_call(
        kernel,
        out_shape=jax.ShapeDtypeStruct((B_PAD, Q_DIM), jnp.float32),
        in_specs=[vmem, vmem, vmem, vmem],
        out_specs=vmem,
        scratch_shapes=[pltpu.VMEM((B_PAD, P_DIM), jnp.float32),
                        pltpu.SMEM((1,), jnp.int32)],
    )


# ------------------------------- glue ---------------------------------------
def build_conv_transpose_matrix(conv_w):
    """Dense matrix of ConvTranspose2d(N->1, K, stride S), NCHW flattening.
       A[(n,i,j), (y,x)] = W[n,0,y-i*S,x-j*S] when inside the kernel window."""
    w = np.asarray(conv_w)                                   # (N, 1, K, K)
    a = np.zeros((N_CH, M_SZ, M_SZ, W_OUT, W_OUT), np.float32)
    for i in range(M_SZ):
        for j in range(M_SZ):
            a[:, i, j, i * S_ST:i * S_ST + K_SZ, j * S_ST:j * S_ST + K_SZ] = w[:, 0]
    return jnp.asarray(a.reshape(P_DIM, WSQ))


if __name__ == "__main__":
    key = jax.random.PRNGKey(0)
    k_cw, k_cb, k_u, k_img = jax.random.split(key, 4)

    # ConvTranspose2d weights (in_ch=N, out_ch=1, K, K) + scalar bias
    conv_w = jax.random.normal(k_cw, (N_CH, 1, K_SZ, K_SZ), jnp.float32)
    if T_NORM:   # normalize_weights(): unit L2 norm per (K*K) filter
        flat = conv_w.reshape(-1, 1, K_SZ * K_SZ)
        flat = flat / jnp.linalg.norm(flat, axis=2, keepdims=True)
        conv_w = flat.reshape(N_CH, 1, K_SZ, K_SZ)
    conv_b = jax.random.normal(k_cb, (1,), jnp.float32) * 0.1

    # U = Linear(W^2 -> M^2, bias=False); F.normalize(dim=0) => unit-norm columns
    u_w = jax.random.normal(k_u, (Q_DIM, WSQ), jnp.float32)
    u_w = u_w / jnp.linalg.norm(u_w, axis=0, keepdims=True)

    # input image batch (flattened M*M images, as implied by img_batch - pred)
    img = jax.random.normal(k_img, (BATCH, Q_DIM), jnp.float32)

    # ---- one-time precompute (glue) ----
    a_mat = build_conv_transpose_matrix(conv_w)               # (P, WSQ)
    g_f32 = a_mat @ u_w.T                                     # (P, Q)  = A @ U^T
    bias_row = (conv_b[0] * jnp.sum(u_w, axis=1))[None, :]    # (1, Q)

    # TODO(synk): R_lr is a free constructor arg in PyTorch; pick it from the
    # Lipschitz constant of the quadratic term so ISTA converges.
    lip = 2.0 * float(np.linalg.norm(np.asarray(g_f32), 2)) ** 2
    r_lr = 0.9 / lip

    h_f32 = (2.0 * r_lr) * (g_f32 @ g_f32.T)                  # (P, P)
    h_bf16 = h_f32.astype(jnp.bfloat16)                       # MXU operand dtype
    g_bf16 = g_f32.astype(jnp.bfloat16)

    fused_forward = make_sparse_net_forward(LMDA, MAX_ITERS, CHECK_EVERY)

    @jax.jit
    def sparse_net_forward(img_batch, h_bf, g_bf, g_full, brow):
        # Constant part of the gradient: C = 2*lr*(bias_row - img) @ G^T (f32).
        c = (2.0 * r_lr) * ((brow - img_batch) @ g_full.T)    # (B, P)
        c_pad = jnp.pad(c, ((0, B_PAD - BATCH), (0, 0)))      # padded rows stay 0
        pred_pad = fused_forward(h_bf, c_pad, g_bf, brow)
        return pred_pad[:BATCH]

    out = sparse_net_forward(img, h_bf16, g_bf16, g_f32, bias_row)
    jax.block_until_ready(out)
    assert out.shape == (BATCH, Q_DIM) and out.dtype == jnp.float32
    assert bool(jnp.all(jnp.isfinite(out)))
    print("KERNEL_OK")
</pallas_src>

<mosaic_0001>
module attributes {stable_mosaic.version = 11 : i64} {
  func.func @sparse_net_kernel(%arg0: memref<256x256xbf16, #tpu.memory_space<vmem>>, %arg1: memref<16x256xf32, #tpu.memory_space<vmem>>, %arg2: memref<256x64xbf16, #tpu.memory_space<vmem>>, %arg3: memref<1x64xf32, #tpu.memory_space<vmem>>, %arg4: memref<16x64xf32, #tpu.memory_space<vmem>>, %arg5: memref<16x256xf32, #tpu.memory_space<vmem>>, %arg6: memref<1xi32, #tpu.memory_space<smem>>) attributes {dimension_semantics = [], scalar_prefetch = 0 : i64, scratch_operands = 2 : i64, tpu.core_type = #tpu.core_type<tc>} {
    %c0 = arith.constant 0 : index
    %c0_0 = arith.constant 0 : index
    %0 = vector.load %arg1[%c0, %c0_0] : memref<16x256xf32, #tpu.memory_space<vmem>>, vector<16x256xf32>
    %cst = arith.constant 0.000000e+00 : f32
    %1 = vector.broadcast %cst : f32 to vector<16x256xf32>
    %2 = arith.subf %1, %0 : vector<16x256xf32>
    %cst_1 = arith.constant 5.000000e-03 : f32
    %3 = vector.broadcast %cst_1 : f32 to vector<16x256xf32>
    %4 = arith.subf %2, %3 : vector<16x256xf32>
    %cst_2 = arith.constant 0.000000e+00 : f32
    %5 = vector.broadcast %cst_2 : f32 to vector<16x256xf32>
    %6 = arith.maximumf %4, %5 : vector<16x256xf32>
    %cst_3 = arith.constant 0.000000e+00 : f32
    %7 = vector.broadcast %cst_3 : f32 to vector<16x256xf32>
    %8 = arith.subf %7, %2 : vector<16x256xf32>
    %cst_4 = arith.constant 5.000000e-03 : f32
    %9 = vector.broadcast %cst_4 : f32 to vector<16x256xf32>
    %10 = arith.subf %8, %9 : vector<16x256xf32>
    %cst_5 = arith.constant 0.000000e+00 : f32
    %11 = vector.broadcast %cst_5 : f32 to vector<16x256xf32>
    %12 = arith.maximumf %10, %11 : vector<16x256xf32>
    %13 = arith.subf %6, %12 : vector<16x256xf32>
    %c0_6 = arith.constant 0 : index
    %c0_7 = arith.constant 0 : index
    %14 = vector.load %arg5[%c0_6, %c0_7] : memref<16x256xf32, #tpu.memory_space<vmem>>, vector<16x256xf32>
    tpu.vector_store %arg5[%c0_6, %c0_7], %13 {strides = array<i32>} : memref<16x256xf32, #tpu.memory_space<vmem>>, vector<16x256xf32>,
    %c0_i32 = arith.constant 0 : i32
    %c0_8 = arith.constant 0 : index
    %15 = memref.load %arg6[%c0_8] : memref<1xi32, #tpu.memory_space<smem>>
    memref.store %c0_i32, %arg6[%c0_8] : memref<1xi32, #tpu.memory_space<smem>>
    %cst_9 = arith.constant 5.000000e-03 : f32
    %c0_i32_10 = arith.constant 0 : i32
    %c63_i32 = arith.constant 63 : i32
    %16 = arith.addi %c0_i32_10, %c63_i32 : i32
    %c1_i32 = arith.constant 1 : i32
    scf.for %arg7 = %c0_i32_10 to %16 step %c1_i32  : i32 {
      %c0_20 = arith.constant 0 : index
      %25 = memref.load %arg6[%c0_20] : memref<1xi32, #tpu.memory_space<smem>>
      %c0_i32_21 = arith.constant 0 : i32
      %26 = arith.cmpi eq, %25, %c0_i32_21 : i32
      %27 = arith.extui %26 : i1 to i32
      %c0_i32_22 = arith.constant 0 : i32
      %28 = arith.cmpi ne, %27, %c0_i32_22 : i32
      scf.if %28 {
        %c0_23 = arith.constant 0 : index
        %c0_24 = arith.constant 0 : index
        %29 = vector.load %arg1[%c0_23, %c0_24] : memref<16x256xf32, #tpu.memory_space<vmem>>, vector<16x256xf32>
        %c0_25 = arith.constant 0 : index
        %c0_26 = arith.constant 0 : index
        %30 = vector.load %arg5[%c0_25, %c0_26] : memref<16x256xf32, #tpu.memory_space<vmem>>, vector<16x256xf32>
        %31 = arith.truncf %30 : vector<16x256xf32> to vector<16x256xbf16>
        %c0_27 = arith.constant 0 : index
        %c0_28 = arith.constant 0 : index
        %32 = vector.load %arg0[%c0_27, %c0_28] : memref<256x256xbf16, #tpu.memory_space<vmem>>, vector<256x256xbf16>
        %cst_29 = arith.constant dense<0.000000e+00> : vector<16x256xf32>
        %33 = tpu.matmul %31, %32, %cst_29 {dimension_numbers = #tpu.dot_dimension_numbers<[1], [0], [0], [1], [0, 0, 1, 1], [], []>} : vector<16x256xbf16>, vector<256x256xbf16>, vector<16x256xf32> -> vector<16x256xf32>
        %34 = arith.addf %33, %29 : vector<16x256xf32>
        %35 = arith.subf %30, %34 : vector<16x256xf32>
        %36 = vector.broadcast %cst_9 : f32 to vector<16x256xf32>
        %37 = arith.subf %35, %36 : vector<16x256xf32>
        %cst_30 = arith.constant 0.000000e+00 : f32
        %38 = vector.broadcast %cst_30 : f32 to vector<16x256xf32>
        %39 = arith.maximumf %37, %38 : vector<16x256xf32>
        %cst_31 = arith.constant 0.000000e+00 : f32
        %40 = vector.broadcast %cst_31 : f32 to vector<16x256xf32>
        %41 = arith.subf %40, %35 : vector<16x256xf32>
        %42 = vector.broadcast %cst_9 : f32 to vector<16x256xf32>
        %43 = arith.subf %41, %42 : vector<16x256xf32>
        %cst_32 = arith.constant 0.000000e+00 : f32
        %44 = vector.broadcast %cst_32 : f32 to vector<16x256xf32>
        %45 = arith.maximumf %43, %44 : vector<16x256xf32>
        %46 = arith.subf %39, %45 : vector<16x256xf32>
        %47 = arith.truncf %46 : vector<16x256xf32> to vector<16x256xbf16>
        %c0_33 = arith.constant 0 : index
        %c0_34 = arith.constant 0 : index
        %48 = vector.load %arg0[%c0_33, %c0_34] : memref<256x256xbf16, #tpu.memory_space<vmem>>, vector<256x256xbf16>
        %cst_35 = arith.constant dense<0.000000e+00> : vector<16x256xf32>
        %49 = tpu.matmul %47, %48, %cst_35 {dimension_numbers = #tpu.dot_dimension_numbers<[1], [0], [0], [1], [0, 0, 1, 1], [], []>} : vector<16x256xbf16>, vector<256x256xbf16>, vector<16x256xf32> -> vector<16x256xf32>
        %50 = arith.addf %49, %29 : vector<16x256xf32>
        %51 = arith.subf %46, %50 : vector<16x256xf32>
        %52 = vector.broadcast %cst_9 : f32 to vector<16x256xf32>
        %53 = arith.subf %51, %52 : vector<16x256xf32>
        %cst_36 = arith.constant 0.000000e+00 : f32
        %54 = vector.broadcast %cst_36 : f32 to vector<16x256xf32>
        %55 = arith.maximumf %53, %54 : vector<16x256xf32>
        %cst_37 = arith.constant 0.000000e+00 : f32
        %56 = vector.broadcast %cst_37 : f32 to vector<16x256xf32>
        %57 = arith.subf %56, %51 : vector<16x256xf32>
        %58 = vector.broadcast %cst_9 : f32 to vector<16x256xf32>
        %59 = arith.subf %57, %58 : vector<16x256xf32>
        %cst_38 = arith.constant 0.000000e+00 : f32
        %60 = vector.broadcast %cst_38 : f32 to vector<16x256xf32>
        %61 = arith.maximumf %59, %60 : vector<16x256xf32>
        %62 = arith.subf %55, %61 : vector<16x256xf32>
        %63 = arith.truncf %62 : vector<16x256xf32> to vector<16x256xbf16>
        %c0_39 = arith.constant 0 : index
        %c0_40 = arith.constant 0 : index
        %64 = vector.load %arg0[%c0_39, %c0_40] : memref<256x256xbf16, #tpu.memory_space<vmem>>, vector<256x256xbf16>
        %cst_41 = arith.constant dense<0.000000e+00> : vector<16x256xf32>
        %65 = tpu.matmul %63, %64, %cst_41 {dimension_numbers = #tpu.dot_dimension_numbers<[1], [0], [0], [1], [0, 0, 1, 1], [], []>} : vector<16x256xbf16>, vector<256x256xbf16>, vector<16x256xf32> -> vector<16x256xf32>
        %66 = arith.addf %65, %29 : vector<16x256xf32>
        %67 = arith.subf %62, %66 : vector<16x256xf32>
        %68 = vector.broadcast %cst_9 : f32 to vector<16x256xf32>
        %69 = arith.subf %67, %68 : vector<16x256xf32>
        %cst_42 = arith.constant 0.000000e+00 : f32
        %70 = vector.broadcast %cst_42 : f32 to vector<16x256xf32>
        %71 = arith.maximumf %69, %70 : vector<16x256xf32>
        %cst_43 = arith.constant 0.000000e+00 : f32
        %72 = vector.broadcast %cst_43 : f32 to vector<16x256xf32>
        %73 = arith.subf %72, %67 : vector<16x256xf32>
        %74 = vector.broadcast %cst_9 : f32 to vector<16x256xf32>
        %75 = arith.subf %73, %74 : vector<16x256xf32>
        %cst_44 = arith.constant 0.000000e+00 : f32
        %76 = vector.broadcast %cst_44 : f32 to vector<16x256xf32>
        %77 = arith.maximumf %75, %76 : vector<16x256xf32>
        %78 = arith.subf %71, %77 : vector<16x256xf32>
        %79 = arith.truncf %78 : vector<16x256xf32> to vector<16x256xbf16>
        %c0_45 = arith.constant 0 : index
        %c0_46 = arith.constant 0 : index
        %80 = vector.load %arg0[%c0_45, %c0_46] : memref<256x256xbf16, #tpu.memory_space<vmem>>, vector<256x256xbf16>
        %cst_47 = arith.constant dense<0.000000e+00> : vector<16x256xf32>
        %81 = tpu.matmul %79, %80, %cst_47 {dimension_numbers = #tpu.dot_dimension_numbers<[1], [0], [0], [1], [0, 0, 1, 1], [], []>} : vector<16x256xbf16>, vector<256x256xbf16>, vector<16x256xf32> -> vector<16x256xf32>
        %82 = arith.addf %81, %29 : vector<16x256xf32>
        %83 = arith.subf %78, %82 : vector<16x256xf32>
        %84 = vector.broadcast %cst_9 : f32 to vector<16x256xf32>
        %85 = arith.subf %83, %84 : vector<16x256xf32>
        %cst_48 = arith.constant 0.000000e+00 : f32
        %86 = vector.broadcast %cst_48 : f32 to vector<16x256xf32>
        %87 = arith.maximumf %85, %86 : vector<16x256xf32>
        %cst_49 = arith.constant 0.000000e+00 : f32
        %88 = vector.broadcast %cst_49 : f32 to vector<16x256xf32>
        %89 = arith.subf %88, %83 : vector<16x256xf32>
        %90 = vector.broadcast %cst_9 : f32 to vector<16x256xf32>
        %91 = arith.subf %89, %90 : vector<16x256xf32>
        %cst_50 = arith.constant 0.000000e+00 : f32
        %92 = vector.broadcast %cst_50 : f32 to vector<16x256xf32>
        %93 = arith.maximumf %91, %92 : vector<16x256xf32>
        %94 = arith.subf %87, %93 : vector<16x256xf32>
        %95 = arith.truncf %94 : vector<16x256xf32> to vector<16x256xbf16>
        %c0_51 = arith.constant 0 : index
        %c0_52 = arith.constant 0 : index
        %96 = vector.load %arg0[%c0_51, %c0_52] : memref<256x256xbf16, #tpu.memory_space<vmem>>, vector<256x256xbf16>
        %cst_53 = arith.constant dense<0.000000e+00> : vector<16x256xf32>
        %97 = tpu.matmul %95, %96, %cst_53 {dimension_numbers = #tpu.dot_dimension_numbers<[1], [0], [0], [1], [0, 0, 1, 1], [], []>} : vector<16x256xbf16>, vector<256x256xbf16>, vector<16x256xf32> -> vector<16x256xf32>
        %98 = arith.addf %97, %29 : vector<16x256xf32>
        %99 = arith.subf %94, %98 : vector<16x256xf32>
        %100 = vector.broadcast %cst_9 : f32 to vector<16x256xf32>
        %101 = arith.subf %99, %100 : vector<16x256xf32>
        %cst_54 = arith.constant 0.000000e+00 : f32
        %102 = vector.broadcast %cst_54 : f32 to vector<16x256xf32>
        %103 = arith.maximumf %101, %102 : vector<16x256xf32>
        %cst_55 = arith.constant 0.000000e+00 : f32
        %104 = vector.broadcast %cst_55 : f32 to vector<16x256xf32>
        %105 = arith.subf %104, %99 : vector<16x256xf32>
        %106 = vector.broadcast %cst_9 : f32 to vector<16x256xf32>
        %107 = arith.subf %105, %106 : vector<16x256xf32>
        %cst_56 = arith.constant 0.000000e+00 : f32
        %108 = vector.broadcast %cst_56 : f32 to vector<16x256xf32>
        %109 = arith.maximumf %107, %108 : vector<16x256xf32>
        %110 = arith.subf %103, %109 : vector<16x256xf32>
        %111 = arith.truncf %110 : vector<16x256xf32> to vector<16x256xbf16>
        %c0_57 = arith.constant 0 : index
        %c0_58 = arith.constant 0 : index
        %112 = vector.load %arg0[%c0_57, %c0_58] : memref<256x256xbf16, #tpu.memory_space<vmem>>, vector<256x256xbf16>
        %cst_59 = arith.constant dense<0.000000e+00> : vector<16x256xf32>
        %113 = tpu.matmul %111, %112, %cst_59 {dimension_numbers = #tpu.dot_dimension_numbers<[1], [0], [0], [1], [0, 0, 1, 1], [], []>} : vector<16x256xbf16>, vector<256x256xbf16>, vector<16x256xf32> -> vector<16x256xf32>
        %114 = arith.addf %113, %29 : vector<16x256xf32>
        %115 = arith.subf %110, %114 : vector<16x256xf32>
        %116 = vector.broadcast %cst_9 : f32 to vector<16x256xf32>
        %117 = arith.subf %115, %116 : vector<16x256xf32>
        %cst_60 = arith.constant 0.000000e+00 : f32
        %118 = vector.broadcast %cst_60 : f32 to vector<16x256xf32>
        %119 = arith.maximumf %117, %118 : vector<16x256xf32>
        %cst_61 = arith.constant 0.000000e+00 : f32
        %120 = vector.broadcast %cst_61 : f32 to vector<16x256xf32>
        %121 = arith.subf %120, %115 : vector<16x256xf32>
        %122 = vector.broadcast %cst_9 : f32 to vector<16x256xf32>
        %123 = arith.subf %121, %122 : vector<16x256xf32>
        %cst_62 = arith.constant 0.000000e+00 : f32
        %124 = vector.broadcast %cst_62 : f32 to vector<16x256xf32>
        %125 = arith.maximumf %123, %124 : vector<16x256xf32>
        %126 = arith.subf %119, %125 : vector<16x256xf32>
        %127 = arith.truncf %126 : vector<16x256xf32> to vector<16x256xbf16>
        %c0_63 = arith.constant 0 : index
        %c0_64 = arith.constant 0 : index
        %128 = vector.load %arg0[%c0_63, %c0_64] : memref<256x256xbf16, #tpu.memory_space<vmem>>, vector<256x256xbf16>
        %cst_65 = arith.constant dense<0.000000e+00> : vector<16x256xf32>
        %129 = tpu.matmul %127, %128, %cst_65 {dimension_numbers = #tpu.dot_dimension_numbers<[1], [0], [0], [1], [0, 0, 1, 1], [], []>} : vector<16x256xbf16>, vector<256x256xbf16>, vector<16x256xf32> -> vector<16x256xf32>
        %130 = arith.addf %129, %29 : vector<16x256xf32>
        %131 = arith.subf %126, %130 : vector<16x256xf32>
        %132 = vector.broadcast %cst_9 : f32 to vector<16x256xf32>
        %133 = arith.subf %131, %132 : vector<16x256xf32>
        %cst_66 = arith.constant 0.000000e+00 : f32
        %134 = vector.broadcast %cst_66 : f32 to vector<16x256xf32>
        %135 = arith.maximumf %133, %134 : vector<16x256xf32>
        %cst_67 = arith.constant 0.000000e+00 : f32
        %136 = vector.broadcast %cst_67 : f32 to vector<16x256xf32>
        %137 = arith.subf %136, %131 : vector<16x256xf32>
        %138 = vector.broadcast %cst_9 : f32 to vector<16x256xf32>
        %139 = arith.subf %137, %138 : vector<16x256xf32>
        %cst_68 = arith.constant 0.000000e+00 : f32
        %140 = vector.broadcast %cst_68 : f32 to vector<16x256xf32>
        %141 = arith.maximumf %139, %140 : vector<16x256xf32>
        %142 = arith.subf %135, %141 : vector<16x256xf32>
        %143 = arith.truncf %142 : vector<16x256xf32> to vector<16x256xbf16>
        %c0_69 = arith.constant 0 : index
        %c0_70 = arith.constant 0 : index
        %144 = vector.load %arg0[%c0_69, %c0_70] : memref<256x256xbf16, #tpu.memory_space<vmem>>, vector<256x256xbf16>
        %cst_71 = arith.constant dense<0.000000e+00> : vector<16x256xf32>
        %145 = tpu.matmul %143, %144, %cst_71 {dimension_numbers = #tpu.dot_dimension_numbers<[1], [0], [0], [1], [0, 0, 1, 1], [], []>} : vector<16x256xbf16>, vector<256x256xbf16>, vector<16x256xf32> -> vector<16x256xf32>
        %146 = arith.addf %145, %29 : vector<16x256xf32>
        %147 = arith.subf %142, %146 : vector<16x256xf32>
        %148 = vector.broadcast %cst_9 : f32 to vector<16x256xf32>
        %149 = arith.subf %147, %148 : vector<16x256xf32>
        %cst_72 = arith.constant 0.000000e+00 : f32
        %150 = vector.broadcast %cst_72 : f32 to vector<16x256xf32>
        %151 = arith.maximumf %149, %150 : vector<16x256xf32>
        %cst_73 = arith.constant 0.000000e+00 : f32
        %152 = vector.broadcast %cst_73 : f32 to vector<16x256xf32>
        %153 = arith.subf %152, %147 : vector<16x256xf32>
        %154 = vector.broadcast %cst_9 : f32 to vector<16x256xf32>
        %155 = arith.subf %153, %154 : vector<16x256xf32>
        %cst_74 = arith.constant 0.000000e+00 : f32
        %156 = vector.broadcast %cst_74 : f32 to vector<16x256xf32>
        %157 = arith.maximumf %155, %156 : vector<16x256xf32>
        %158 = arith.subf %151, %157 : vector<16x256xf32>
        %159 = arith.subf %158, %142 : vector<16x256xf32>
        %160 = arith.mulf %159, %159 : vector<16x256xf32>
        %161 = vector.shape_cast %160 : vector<16x256xf32> to vector<1x16x256xf32>
        %cst_75 = arith.constant dense<0.000000e+00> : vector<1xf32>
        %162 = vector.multi_reduction <add>, %161, %cst_75 [1, 2] : vector<1x16x256xf32> to vector<1xf32>
        %163 = vector.shape_cast %162 : vector<1xf32> to vector<1x1x1xf32>
        %164 = vector.extract %163[0, 0, 0] : f32 from vector<1x1x1xf32>
        %165 = arith.mulf %142, %142 : vector<16x256xf32>
        %166 = vector.shape_cast %165 : vector<16x256xf32> to vector<1x16x256xf32>
        %cst_76 = arith.constant dense<0.000000e+00> : vector<1xf32>
        %167 = vector.multi_reduction <add>, %166, %cst_76 [1, 2] : vector<1x16x256xf32> to vector<1xf32>
        %168 = vector.shape_cast %167 : vector<1xf32> to vector<1x1x1xf32>
        %169 = vector.extract %168[0, 0, 0] : f32 from vector<1x1x1xf32>
        %cst_77 = arith.constant 9.99999974E-5 : f32
        %170 = arith.mulf %cst_77, %169 : f32
        %171 = arith.cmpf olt, %164, %170 : f32
        %cst_78 = arith.constant 0.000000e+00 : f32
        %172 = arith.cmpf oeq, %169, %cst_78 : f32
        %cst_79 = arith.constant 0.000000e+00 : f32
        %173 = arith.cmpf oeq, %164, %cst_79 : f32
        %174 = arith.andi %172, %173 : i1
        %175 = arith.ori %171, %174 : i1
        %c0_80 = arith.constant 0 : index
        %c0_81 = arith.constant 0 : index
        %176 = vector.load %arg5[%c0_80, %c0_81] : memref<16x256xf32, #tpu.memory_space<vmem>>, vector<16x256xf32>
        tpu.vector_store %arg5[%c0_80, %c0_81], %158 {strides = array<i32>} : memref<16x256xf32, #tpu.memory_space<vmem>>, vector<16x256xf32>,
        %c1_i32_82 = arith.constant 1 : i32
        %c0_i32_83 = arith.constant 0 : i32
        %177 = arith.select %175, %c1_i32_82, %c0_i32_83 : i32
        %c0_84 = arith.constant 0 : index
        %178 = memref.load %arg6[%c0_84] : memref<1xi32, #tpu.memory_space<smem>>
        memref.store %177, %arg6[%c0_84] : memref<1xi32, #tpu.memory_space<smem>>
      } else {
      }
    }
    %c0_11 = arith.constant 0 : index
    %c0_12 = arith.constant 0 : index
    %17 = vector.load %arg5[%c0_11, %c0_12] : memref<16x256xf32, #tpu.memory_space<vmem>>, vector<16x256xf32>
    %18 = arith.truncf %17 : vector<16x256xf32> to vector<16x256xbf16>
    %c0_13 = arith.constant 0 : index
    %c0_14 = arith.constant 0 : index
    %19 = vector.load %arg2[%c0_13, %c0_14] : memref<256x64xbf16, #tpu.memory_space<vmem>>, vector<256x64xbf16>
    %cst_15 = arith.constant dense<0.000000e+00> : vector<16x64xf32>
    %20 = tpu.matmul %18, %19, %cst_15 {dimension_numbers = #tpu.dot_dimension_numbers<[1], [0], [0], [1], [0, 0, 1, 1], [], []>} : vector<16x256xbf16>, vector<256x64xbf16>, vector<16x64xf32> -> vector<16x64xf32>
    %c0_16 = arith.constant 0 : index
    %c0_17 = arith.constant 0 : index
    %21 = vector.load %arg3[%c0_16, %c0_17] : memref<1x64xf32, #tpu.memory_space<vmem>>, vector<1x64xf32>
    %22 = vector.broadcast %21 : vector<1x64xf32> to vector<16x64xf32>
    %23 = arith.addf %20, %22 : vector<16x64xf32>
    %c0_18 = arith.constant 0 : index
    %c0_19 = arith.constant 0 : index
    %24 = vector.load %arg4[%c0_18, %c0_19] : memref<16x64xf32, #tpu.memory_space<vmem>>, vector<16x64xf32>
    tpu.vector_store %arg4[%c0_18, %c0_19], %23 {strides = array<i32>} : memref<16x64xf32, #tpu.memory_space<vmem>>, vector<16x64xf32>,
    return
  }
}

</mosaic_0001>

<llo_original>
// kernel: sparse_net_forward.1
$region0: #{sparse_net_forward.1}
  #allocation0 [shape = 'u32[]', space=smem, size = 0x4, offset = 0x4, fixed_abs, tag = 'smem constant byte address 0x4 - core index']
  #allocation1 [shape = 'u32[144,128]{1,0:T(1,128)}', space=vmem, size = 0x12000, scoped, tag = 'internal scratch']
  #allocation2 [shape = 'f32[16,256]{1,0:T(8,128)}', space=vmem, size = 0x4000, scoped, tag = 'scratch operand']
  #allocation3 [shape = 's32[1]{0:T(128)}', space=smem, size = 0x200, scoped, tag = 'scratch operand']
  %s0 = inlined_call_operand.vmem [shape: bf16[256,256], index: 0, kind: input, shape index: {}]
  %s1 = inlined_call_operand.vmem [shape: f32[16,256], index: 1, kind: input, shape index: {}]
  %s2 = inlined_call_operand.vmem [shape: bf16[256,64], index: 2, kind: input, shape index: {}]
  %s3 = inlined_call_operand.vmem [shape: f32[1,64], index: 3, kind: input, shape index: {}]
  %s4 = inlined_call_operand.vmem [shape: f32[16,64], index: 4, kind: output, shape index: {}]
  %s5 = sld [smem:[#allocation0]]
  $region37: #{sparse_net_forward.1} parent=0
    _
  %s7 = ssub.s32 1, %s5
  %s8 = scalar_select 0, %s7, %s5
  // Predicated region
  $region2: #{sparse_net_forward.1} parent=0 // pred_check
    _
  $region3: #{sparse_net_forward.1} parent=0 // pred_check_branch
    %10 = sbr.rel (0) target = $region5
  $region4: #{sparse_net_forward.1} parent=0 // pred_region
    _
  $region5: #{sparse_net_forward.1} parent=0 // pred_fallthru
    _
  // Predicated region
  $region6: #{sparse_net_forward.1} parent=0 // pred_check
    _
  $region7: #{sparse_net_forward.1} parent=0 // pred_check_branch
    %12 = sbr.rel (0) target = $region9
  $region8: #{sparse_net_forward.1} parent=0 // pred_region
    _
  $region9: #{sparse_net_forward.1} parent=0 // pred_fallthru
    _
  // Predicated region
  $region10: #{sparse_net_forward.1} parent=0 // pred_check
    _
  $region11: #{sparse_net_forward.1} parent=0 // pred_check_branch
    %14 = sbr.rel (0) target = $region13
  $region12: #{sparse_net_forward.1} parent=0 // pred_region
    _
  $region13: #{sparse_net_forward.1} parent=0 // pred_fallthru
    _
  // Predicated region
  $region14: #{sparse_net_forward.1} parent=0 // pred_check
    _
  $region15: #{sparse_net_forward.1} parent=0 // pred_check_branch
    %16 = sbr.rel (0) target = $region17
  $region16: #{sparse_net_forward.1} parent=0 // pred_region
    _
  $region17: #{sparse_net_forward.1} parent=0 // pred_fallthru
    _
  %v18 = vld [vmem:[%s1] sm:$0xff]
  %v19 = vld [vmem:[%s1 + $0x8] sm:$0xff]
  %v20 = vld [vmem:[%s1 + $0x10] sm:$0xff]
  %v21 = vld [vmem:[%s1 + $0x18] sm:$0xff]
  %v22 = vsub.f32 0.0, %v18
  %v23 = vsub.f32 0.0, %v19
  %v24 = vsub.f32 0.0, %v20
  %v25 = vsub.f32 0.0, %v21
  %v26 = vsub.f32 %v22, 0.005
  %v27 = vsub.f32 %v23, 0.005
  %v28 = vsub.f32 %v24, 0.005
  %v29 = vsub.f32 %v25, 0.005
  %v30 = vmax.f32 %v26, 0.0
  %v31 = vmax.f32 %v27, 0.0
  %v32 = vmax.f32 %v28, 0.0
  %v33 = vmax.f32 %v29, 0.0
  %v34 = vsub.f32 0.0, %v22
  %v35 = vsub.f32 0.0, %v23
  %v36 = vsub.f32 0.0, %v24
  %v37 = vsub.f32 0.0, %v25
  %v38 = vsub.f32 %v34, 0.005
  %v39 = vsub.f32 %v35, 0.005
  %v40 = vsub.f32 %v36, 0.005
  %v41 = vsub.f32 %v37, 0.005
  %v42 = vmax.f32 %v38, 0.0
  %v43 = vmax.f32 %v39, 0.0
  %v44 = vmax.f32 %v40, 0.0
  %v45 = vmax.f32 %v41, 0.0
  %v46 = vsub.f32 %v30, %v42
  %v47 = vsub.f32 %v31, %v43
  %v48 = vsub.f32 %v32, %v44
  %v49 = vsub.f32 %v33, %v45
  %50 = vst [vmem:[#allocation2] sm:$0xff] %v46
  %51 = vst [vmem:[#allocation2 + $0x8] sm:$0xff] %v47
  %52 = vst [vmem:[#allocation2 + $0x10] sm:$0xff] %v48
  %53 = vst [vmem:[#allocation2 + $0x18] sm:$0xff] %v49
  %s54 = scalar_lea.smem [#allocation3], 0
  %55 = sst [smem:[%s54]] 0
  loop: start=0, step=1, limit=63
  $region18: #{sparse_net_forward.1} parent=0 // loop_pre_header
    _
  $region19: #{sparse_net_forward.1} parent=0 // loop_header
    %s57 = sphi 0, %s61
    %p58 = scmp.ge.s32.totalorder %s57, 63
  $region20: #{sparse_net_forward.1} parent=0 // loop_header_branch
    %60 = sbr.rel (%p58) target = $region24
  $region21: #{sparse_net_forward.1} parent=0 // loop_body
    %s62 = sld [smem:[#allocation3]]
    %p63 = scmp.eq.s32.totalorder %s62, 0
    // Predicated region
    $region25: #{sparse_net_forward.1} parent=21 // pred_check
      %p64 = pneg %p63
    $region26: #{sparse_net_forward.1} parent=21 // pred_check_branch
      %66 = sbr.rel (%p64) target = $region28
    $region27: #{sparse_net_forward.1} parent=21 // pred_region
      %v67 = vld [vmem:[%s1] sm:$0xff]
      %v68 = vld [vmem:[%s1 + $0x8] sm:$0xff]
      %v69 = vld [vmem:[%s1 + $0x10] sm:$0xff]
      %v70 = vld [vmem:[%s1 + $0x18] sm:$0xff]
      %v71 = vld [vmem:[#allocation2] sm:$0xff]
      %v72 = vld [vmem:[#allocation2 + $0x8] sm:$0xff]
      %v73 = vld [vmem:[#allocation2 + $0x10] sm:$0xff]
      %v74 = vld [vmem:[#allocation2 + $0x18] sm:$0xff]
      %v75 = vpack.c.bf16 %v73, %v71
      %v76 = vpack.c.bf16 %v74, %v72
      %v77 = vld [vmem:[%s0] sm:$0xff]
      %v78 = vld [vmem:[%s0 + $0x8] sm:$0xff]
      %v79 = vld [vmem:[%s0 + $0x10] sm:$0xff]
      %v80 = vld [vmem:[%s0 + $0x18] sm:$0xff]
      %v81 = vld [vmem:[%s0 + $0x20] sm:$0xff]
      %v82 = vld [vmem:[%s0 + $0x28] sm:$0xff]
      %v83 = vld [vmem:[%s0 + $0x30] sm:$0xff]
      %v84 = vld [vmem:[%s0 + $0x38] sm:$0xff]
      %v85 = vld [vmem:[%s0 + $0x40] sm:$0xff]
      %v86 = vld [vmem:[%s0 + $0x48] sm:$0xff]
      %v87 = vld [vmem:[%s0 + $0x50] sm:$0xff]
      %v88 = vld [vmem:[%s0 + $0x58] sm:$0xff]
      %v89 = vld [vmem:[%s0 + $0x60] sm:$0xff]
      %v90 = vld [vmem:[%s0 + $0x68] sm:$0xff]
      %v91 = vld [vmem:[%s0 + $0x70] sm:$0xff]
      %v92 = vld [vmem:[%s0 + $0x78] sm:$0xff]
      %v93 = vld [vmem:[%s0 + $0x80] sm:$0xff]
      %v94 = vld [vmem:[%s0 + $0x88] sm:$0xff]
      %v95 = vld [vmem:[%s0 + $0x90] sm:$0xff]
      %v96 = vld [vmem:[%s0 + $0x98] sm:$0xff]
      %v97 = vld [vmem:[%s0 + $0xa0] sm:$0xff]
      %v98 = vld [vmem:[%s0 + $0xa8] sm:$0xff]
      %v99 = vld [vmem:[%s0 + $0xb0] sm:$0xff]
      %v100 = vld [vmem:[%s0 + $0xb8] sm:$0xff]
      %v101 = vld [vmem:[%s0 + $0xc0] sm:$0xff]
      %v102 = vld [vmem:[%s0 + $0xc8] sm:$0xff]
      %v103 = vld [vmem:[%s0 + $0xd0] sm:$0xff]
      %v104 = vld [vmem:[%s0 + $0xd8] sm:$0xff]
      %v105 = vld [vmem:[%s0 + $0xe0] sm:$0xff]
      %v106 = vld [vmem:[%s0 + $0xe8] sm:$0xff]
      %v107 = vld [vmem:[%s0 + $0xf0] sm:$0xff]
      %v108 = vld [vmem:[%s0 + $0xf8] sm:$0xff]
      %v141 = vunpack.c.l.b16 %v77
      %v142 = vunpack.c.h.b16 %v77
      %v143 = vunpack.c.l.b16 %v78
      %v144 = vunpack.c.h.b16 %v78
      %v145 = vunpack.c.l.b16 %v79
      %v146 = vunpack.c.h.b16 %v79
      %v147 = vunpack.c.l.b16 %v80
      %v148 = vunpack.c.h.b16 %v80
      %v149 = vunpack.c.l.b16 %v81
      %v150 = vunpack.c.h.b16 %v81
      %v151 = vunpack.c.l.b16 %v82
      %v152 = vunpack.c.h.b16 %v82
      %v153 = vunpack.c.l.b16 %v83
      %v154 = vunpack.c.h.b16 %v83
      %v155 = vunpack.c.l.b16 %v84
      %v156 = vunpack.c.h.b16 %v84
      %v157 = vunpack.c.l.b16 %v85
      %v158 = vunpack.c.h.b16 %v85
      %v159 = vunpack.c.l.b16 %v86
      %v160 = vunpack.c.h.b16 %v86
      %v161 = vunpack.c.l.b16 %v87
      %v162 = vunpack.c.h.b16 %v87
      %v163 = vunpack.c.l.b16 %v88
      %v164 = vunpack.c.h.b16 %v88
      %v165 = vunpack.c.l.b16 %v89
      %v166 = vunpack.c.h.b16 %v89
      %v167 = vunpack.c.l.b16 %v90
      %v168 = vunpack.c.h.b16 %v90
      %v169 = vunpack.c.l.b16 %v91
      %v170 = vunpack.c.h.b16 %v91
      %v171 = vunpack.c.l.b16 %v92
      %v172 = vunpack.c.h.b16 %v92
      %v173 = vunpack.c.l.b16 %v93
      %v174 = vunpack.c.h.b16 %v93
      %v175 = vunpack.c.l.b16 %v94
      %v176 = vunpack.c.h.b16 %v94
      %v177 = vunpack.c.l.b16 %v95
      %v178 = vunpack.c.h.b16 %v95
      %v179 = vunpack.c.l.b16 %v96
      %v180 = vunpack.c.h.b16 %v96
      %v181 = vunpack.c.l.b16 %v97
      %v182 = vunpack.c.h.b16 %v97
      %v183 = vunpack.c.l.b16 %v98
      %v184 = vunpack.c.h.b16 %v98
      %v185 = vunpack.c.l.b16 %v99
      %v186 = vunpack.c.h.b16 %v99
      %v187 = vunpack.c.l.b16 %v100
      %v188 = vunpack.c.h.b16 %v100
      %v189 = vunpack.c.l.b16 %v101
      %v190 = vunpack.c.h.b16 %v101
      %v191 = vunpack.c.l.b16 %v102
      %v192 = vunpack.c.h.b16 %v102
      %v193 = vunpack.c.l.b16 %v103
      %v194 = vunpack.c.h.b16 %v103
      %v195 = vunpack.c.l.b16 %v104
      %v196 = vunpack.c.h.b16 %v104
      %v197 = vunpack.c.l.b16 %v105
      %v198 = vunpack.c.h.b16 %v105
      %v199 = vunpack.c.l.b16 %v106
      %v200 = vunpack.c.h.b16 %v106
      %v201 = vunpack.c.l.b16 %v107
      %v202 = vunpack.c.h.b16 %v107
      %v203 = vunpack.c.l.b16 %v108
      %v204 = vunpack.c.h.b16 %v108
      %v205 = vpack.c.b16 %v143, %v141
      %v206 = vpack.c.b16 %v144, %v142
      %v207 = vpack.c.b16 %v147, %v145
      %v208 = vpack.c.b16 %v148, %v146
      %v209 = vpack.c.b16 %v151, %v149
      %v210 = vpack.c.b16 %v152, %v150
      %v211 = vpack.c.b16 %v155, %v153
      %v212 = vpack.c.b16 %v156, %v154
      %v213 = vpack.c.b16 %v159, %v157
      %v214 = vpack.c.b16 %v160, %v158
      %v215 = vpack.c.b16 %v163, %v161
      %v216 = vpack.c.b16 %v164, %v162
      %v217 = vpack.c.b16 %v167, %v165
      %v218 = vpack.c.b16 %v168, %v166
      %v219 = vpack.c.b16 %v171, %v169
      %v220 = vpack.c.b16 %v172, %v170
      %v221 = vpack.c.b16 %v175, %v173
      %v222 = vpack.c.b16 %v176, %v174
      %v223 = vpack.c.b16 %v179, %v177
      %v224 = vpack.c.b16 %v180, %v178
      %v225 = vpack.c.b16 %v183, %v181
      %v226 = vpack.c.b16 %v184, %v182
      %v227 = vpack.c.b16 %v187, %v185
      %v228 = vpack.c.b16 %v188, %v186
      %v229 = vpack.c.b16 %v191, %v189
      %v230 = vpack.c.b16 %v192, %v190
      %v231 = vpack.c.b16 %v195, %v193
      %v232 = vpack.c.b16 %v196, %v194
      %v233 = vpack.c.b16 %v199, %v197
      %v234 = vpack.c.b16 %v200, %v198
      %v235 = vpack.c.b16 %v203, %v201
      %v236 = vpack.c.b16 %v204, %v202
      %269 = vmatprep.subr.bf16.mxu0 %v220
      %270 = vmatpush1.bf16.msra.mxu0 %v219
      %271 = vmatprep.subr.bf16.mxu0 %v218
      %272 = vmatpush1.bf16.msra.mxu0 %v217
      %273 = vmatprep.subr.bf16.mxu0 %v216
      %274 = vmatpush1.bf16.msra.mxu0 %v215
      %275 = vmatprep.subr.bf16.mxu0 %v214
      %276 = vmatpush1.bf16.msra.mxu0 %v213
      %277 = vmatprep.subr.bf16.mxu0 %v212
      %278 = vmatpush1.bf16.msra.mxu0 %v211
      %279 = vmatprep.subr.bf16.mxu0 %v210
      %280 = vmatpush1.bf16.msra.mxu0 %v209
      %281 = vmatprep.subr.bf16.mxu0 %v208
      %282 = vmatpush1.bf16.msra.mxu0 %v207
      %283 = vmatprep.subr.bf16.mxu0 %v206
      %284 = vmatpush1.bf16.msra.mxu0 %v205
      %285 = vmatprep.subr.bf16.mxu0 %v236
      %286 = vmatpush2.bf16.msra.mxu0 %v235
      %287 = vmatprep.subr.bf16.mxu0 %v234
      %288 = vmatpush2.bf16.msra.mxu0 %v233
      %289 = vmatprep.subr.bf16.mxu0 %v232
      %290 = vmatpush2.bf16.msra.mxu0 %v231
      %291 = vmatprep.subr.bf16.mxu0 %v230
      %292 = vmatpush2.bf16.msra.mxu0 %v229
      %293 = vmatprep.subr.bf16.mxu0 %v228
      %294 = vmatpush2.bf16.msra.mxu0 %v227
      %295 = vmatprep.subr.bf16.mxu0 %v226
      %296 = vmatpush2.bf16.msra.mxu0 %v225
      %297 = vmatprep.subr.bf16.mxu0 %v224
      %298 = vmatpush2.bf16.msra.mxu0 %v223
      %299 = vmatprep.subr.bf16.mxu0 %v222
      %300 = vmatpush2.bf16.msra.mxu0 %v221
      %301 = vmatprep.mubr.bf16.mxu0 %v76
      %302 = vmatmul.mubr.bf16.gmra.mxu0 %v75
      %v303 = vpop.f32.mrf.mxu0
      %v304 = vadd.f32 %v67, %v303
      %v305 = vpop.f32.mrf.mxu0
      %v306 = vadd.f32 %v68, %v305
      %v307 = vpop.f32.mrf.mxu0
      %v308 = vadd.f32 %v69, %v307
      %v309 = vpop.f32.mrf.mxu0
      %v310 = vadd.f32 %v70, %v309
      %311 = vdwg.mxu0
      %v312 = vsub.f32 %v71, %v304
      %v313 = vsub.f32 %v72, %v306
      %v314 = vsub.f32 %v73, %v308
      %v315 = vsub.f32 %v74, %v310
      %v316 = vsub.f32 %v312, 0.005
      %v317 = vsub.f32 %v313, 0.005
      %v318 = vsub.f32 %v314, 0.005
      %v319 = vsub.f32 %v315, 0.005
      %v320 = vmax.f32 %v316, 0.0
      %v321 = vmax.f32 %v317, 0.0
      %v322 = vmax.f32 %v318, 0.0
      %v323 = vmax.f32 %v319, 0.0
      %v324 = vsub.f32 0.0, %v312
      %v325 = vsub.f32 0.0, %v313
      %v326 = vsub.f32 0.0, %v314
      %v327 = vsub.f32 0.0, %v315
      %v328 = vsub.f32 %v324, 0.005
      %v329 = vsub.f32 %v325, 0.005
      %v330 = vsub.f32 %v326, 0.005
      %v331 = vsub.f32 %v327, 0.005
      %v332 = vmax.f32 %v328, 0.0
      %v333 = vmax.f32 %v329, 0.0
      %v334 = vmax.f32 %v330, 0.0
      %v335 = vmax.f32 %v331, 0.0
      %v336 = vsub.f32 %v320, %v332
      %v337 = vsub.f32 %v321, %v333
      %v338 = vsub.f32 %v322, %v334
      %v339 = vsub.f32 %v323, %v335
      %v340 = vpack.c.bf16 %v338, %v336
      %v341 = vpack.c.bf16 %v339, %v337
      %342 = vmatprep.subr.bf16.mxu0 %v220
      %343 = vmatpush1.bf16.msra.mxu0 %v219
      %344 = vmatprep.subr.bf16.mxu0 %v218
      %345 = vmatpush1.bf16.msra.mxu0 %v217
      %346 = vmatprep.subr.bf16.mxu0 %v216
      %347 = vmatpush1.bf16.msra.mxu0 %v215
      %348 = vmatprep.subr.bf16.mxu0 %v214
      %349 = vmatpush1.bf16.msra.mxu0 %v213
      %350 = vmatprep.subr.bf16.mxu0 %v212
      %351 = vmatpush1.bf16.msra.mxu0 %v211
      %352 = vmatprep.subr.bf16.mxu0 %v210
      %353 = vmatpush1.bf16.msra.mxu0 %v209
      %354 = vmatprep.subr.bf16.mxu0 %v208
      %355 = vmatpush1.bf16.msra.mxu0 %v207
      %356 = vmatprep.subr.bf16.mxu0 %v206
      %357 = vmatpush1.bf16.msra.mxu0 %v205
      %358 = vmatprep.subr.bf16.mxu0 %v236
      %359 = vmatpush2.bf16.msra.mxu0 %v235
      %360 = vmatprep.subr.bf16.mxu0 %v234
      %361 = vmatpush2.bf16.msra.mxu0 %v233
      %362 = vmatprep.subr.bf16.mxu0 %v232
      %363 = vmatpush2.bf16.msra.mxu0 %v231
      %364 = vmatprep.subr.bf16.mxu0 %v230
      %365 = vmatpush2.bf16.msra.mxu0 %v229
      %366 = vmatprep.subr.bf16.mxu0 %v228
      %367 = vmatpush2.bf16.msra.mxu0 %v227
      %368 = vmatprep.subr.bf16.mxu0 %v226
      %369 = vmatpush2.bf16.msra.mxu0 %v225
      %370 = vmatprep.subr.bf16.mxu0 %v224
      %371 = vmatpush2.bf16.msra.mxu0 %v223
      %372 = vmatprep.subr.bf16.mxu0 %v222
      %373 = vmatpush2.bf16.msra.mxu0 %v221
      %374 = vmatprep.mubr.bf16.mxu0 %v341
      %375 = vmatmul.mubr.bf16.gmra.mxu0 %v340
      %v376 = vpop.f32.mrf.mxu0
      %v377 = vadd.f32 %v67, %v376
      %v378 = vpop.f32.mrf.mxu0
      %v379 = vadd.f32 %v68, %v378
      %v380 = vpop.f32.mrf.mxu0
      %v381 = vadd.f32 %v69, %v380
      %v382 = vpop.f32.mrf.mxu0
      %v383 = vadd.f32 %v70, %v382
      %384 = vdwg.mxu0
      %v385 = vsub.f32 %v336, %v377
      %v386 = vsub.f32 %v337, %v379
      %v387 = vsub.f32 %v338, %v381
      %v388 = vsub.f32 %v339, %v383
      %v389 = vsub.f32 %v385, 0.005
      %v390 = vsub.f32 %v386, 0.005
      %v391 = vsub.f32 %v387, 0.005
      %v392 = vsub.f32 %v388, 0.005
      %v393 = vmax.f32 %v389, 0.0
      %v394 = vmax.f32 %v390, 0.0
      %v395 = vmax.f32 %v391, 0.0
      %v396 = vmax.f32 %v392, 0.0
      %v397 = vsub.f32 0.0, %v385
      %v398 = vsub.f32 0.0, %v386
      %v399 = vsub.f32 0.0, %v387
      %v400 = vsub.f32 0.0, %v388
      %v401 = vsub.f32 %v397, 0.005
      %v402 = vsub.f32 %v398, 0.005
      %v403 = vsub.f32 %v399, 0.005
      %v404 = vsub.f32 %v400, 0.005
      %v405 = vmax.f32 %v401, 0.0
      %v406 = vmax.f32 %v402, 0.0
      %v407 = vmax.f32 %v403, 0.0
      %v408 = vmax.f32 %v404, 0.0
      %v409 = vsub.f32 %v393, %v405
      %v410 = vsub.f32 %v394, %v406
      %v411 = vsub.f32 %v395, %v407
      %v412 = vsub.f32 %v396, %v408
      %v413 = vpack.c.bf16 %v411, %v409
      %v414 = vpack.c.bf16 %v412, %v410
      %415 = vmatprep.subr.bf16.mxu0 %v220
      %416 = vmatpush1.bf16.msra.mxu0 %v219
      %417 = vmatprep.subr.bf16.mxu0 %v218
      %418 = vmatpush1.bf16.msra.mxu0 %v217
      %419 = vmatprep.subr.bf16.mxu0 %v216
      %420 = vmatpush1.bf16.msra.mxu0 %v215
      %421 = vmatprep.subr.bf16.mxu0 %v214
      %422 = vmatpush1.bf16.msra.mxu0 %v213
      %423 = vmatprep.subr.bf16.mxu0 %v212
      %424 = vmatpush1.bf16.msra.mxu0 %v211
      %425 = vmatprep.subr.bf16.mxu0 %v210
      %426 = vmatpush1.bf16.msra.mxu0 %v209
      %427 = vmatprep.subr.bf16.mxu0 %v208
      %428 = vmatpush1.bf16.msra.mxu0 %v207
      %429 = vmatprep.subr.bf16.mxu0 %v206
      %430 = vmatpush1.bf16.msra.mxu0 %v205
      %431 = vmatprep.subr.bf16.mxu0 %v236
      %432 = vmatpush2.bf16.msra.mxu0 %v235
      %433 = vmatprep.subr.bf16.mxu0 %v234
      %434 = vmatpush2.bf16.msra.mxu0 %v233
      %435 = vmatprep.subr.bf16.mxu0 %v232
      %436 = vmatpush2.bf16.msra.mxu0 %v231
      %437 = vmatprep.subr.bf16.mxu0 %v230
      %438 = vmatpush2.bf16.msra.mxu0 %v229
      %439 = vmatprep.subr.bf16.mxu0 %v228
      %440 = vmatpush2.bf16.msra.mxu0 %v227
      %441 = vmatprep.subr.bf16.mxu0 %v226
      %442 = vmatpush2.bf16.msra.mxu0 %v225
      %443 = vmatprep.subr.bf16.mxu0 %v224
      %444 = vmatpush2.bf16.msra.mxu0 %v223
      %445 = vmatprep.subr.bf16.mxu0 %v222
      %446 = vmatpush2.bf16.msra.mxu0 %v221
      %447 = vmatprep.mubr.bf16.mxu0 %v414
      %448 = vmatmul.mubr.bf16.gmra.mxu0 %v413
      %v449 = vpop.f32.mrf.mxu0
      %v450 = vadd.f32 %v67, %v449
      %v451 = vpop.f32.mrf.mxu0
      %v452 = vadd.f32 %v68, %v451
      %v453 = vpop.f32.mrf.mxu0
      %v454 = vadd.f32 %v69, %v453
      %v455 = vpop.f32.mrf.mxu0
      %v456 = vadd.f32 %v70, %v455
      %457 = vdwg.mxu0
      %v458 = vsub.f32 %v409, %v450
      %v459 = vsub.f32 %v410, %v452
      %v460 = vsub.f32 %v411, %v454
      %v461 = vsub.f32 %v412, %v456
      %v462 = vsub.f32 %v458, 0.005
      %v463 = vsub.f32 %v459, 0.005
      %v464 = vsub.f32 %v460, 0.005
      %v465 = vsub.f32 %v461, 0.005
      %v466 = vmax.f32 %v462, 0.0
      %v467 = vmax.f32 %v463, 0.0
      %v468 = vmax.f32 %v464, 0.0
      %v469 = vmax.f32 %v465, 0.0
      %v470 = vsub.f32 0.0, %v458
      %v471 = vsub.f32 0.0, %v459
      %v472 = vsub.f32 0.0, %v460
      %v473 = vsub.f32 0.0, %v461
      %v474 = vsub.f32 %v470, 0.005
      %v475 = vsub.f32 %v471, 0.005
      %v476 = vsub.f32 %v472, 0.005
      %v477 = vsub.f32 %v473, 0.005
      %v478 = vmax.f32 %v474, 0.0
      %v479 = vmax.f32 %v475, 0.0
      %v480 = vmax.f32 %v476, 0.0
      %v481 = vmax.f32 %v477, 0.0
      %v482 = vsub.f32 %v466, %v478
      %v483 = vsub.f32 %v467, %v479
      %v484 = vsub.f32 %v468, %v480
      %v485 = vsub.f32 %v469, %v481
      %v486 = vpack.c.bf16 %v484, %v482
      %v487 = vpack.c.bf16 %v485, %v483
      %488 = vmatprep.subr.bf16.mxu0 %v220
      %489 = vmatpush1.bf16.msra.mxu0 %v219
      %490 = vmatprep.subr.bf16.mxu0 %v218
      %491 = vmatpush1.bf16.msra.mxu0 %v217
      %492 = vmatprep.subr.bf16.mxu0 %v216
      %493 = vmatpush1.bf16.msra.mxu0 %v215
      %494 = vmatprep.subr.bf16.mxu0 %v214
      %495 = vmatpush1.bf16.msra.mxu0 %v213
      %496 = vmatprep.subr.bf16.mxu0 %v212
      %497 = vmatpush1.bf16.msra.mxu0 %v211
      %498 = vmatprep.subr.bf16.mxu0 %v210
      %499 = vmatpush1.bf16.msra.mxu0 %v209
      %500 = vmatprep.subr.bf16.mxu0 %v208
      %501 = vmatpush1.bf16.msra.mxu0 %v207
      %502 = vmatprep.subr.bf16.mxu0 %v206
      %503 = vmatpush1.bf16.msra.mxu0 %v205
      %504 = vmatprep.subr.bf16.mxu0 %v236
      %505 = vmatpush2.bf16.msra.mxu0 %v235
      %506 = vmatprep.subr.bf16.mxu0 %v234
      %507 = vmatpush2.bf16.msra.mxu0 %v233
      %508 = vmatprep.subr.bf16.mxu0 %v232
      %509 = vmatpush2.bf16.msra.mxu0 %v231
      %510 = vmatprep.subr.bf16.mxu0 %v230
      %511 = vmatpush2.bf16.msra.mxu0 %v229
      %512 = vmatprep.subr.bf16.mxu0 %v228
      %513 = vmatpush2.bf16.msra.mxu0 %v227
      %514 = vmatprep.subr.bf16.mxu0 %v226
      %515 = vmatpush2.bf16.msra.mxu0 %v225
      %516 = vmatprep.subr.bf16.mxu0 %v224
      %517 = vmatpush2.bf16.msra.mxu0 %v223
      %518 = vmatprep.subr.bf16.mxu0 %v222
      %519 = vmatpush2.bf16.msra.mxu0 %v221
      %520 = vmatprep.mubr.bf16.mxu0 %v487
      %521 = vmatmul.mubr.bf16.gmra.mxu0 %v486
      %v522 = vpop.f32.mrf.mxu0
      %v523 = vadd.f32 %v67, %v522
      %v524 = vpop.f32.mrf.mxu0
      %v525 = vadd.f32 %v68, %v524
      %v526 = vpop.f32.mrf.mxu0
      %v527 = vadd.f32 %v69, %v526
      %v528 = vpop.f32.mrf.mxu0
      %v529 = vadd.f32 %v70, %v528
      %530 = vdwg.mxu0
      %v531 = vsub.f32 %v482, %v523
      %v532 = vsub.f32 %v483, %v525
      %v533 = vsub.f32 %v484, %v527
      %v534 = vsub.f32 %v485, %v529
      %v535 = vsub.f32 %v531, 0.005
      %v536 = vsub.f32 %v532, 0.005
      %v537 = vsub.f32 %v533, 0.005
      %v538 = vsub.f32 %v534, 0.005
      %v539 = vmax.f32 %v535, 0.0
      %v540 = vmax.f32 %v536, 0.0
      %v541 = vmax.f32 %v537, 0.0
      %v542 = vmax.f32 %v538, 0.0
      %v543 = vsub.f32 0.0, %v531
      %v544 = vsub.f32 0.0, %v532
      %v545 = vsub.f32 0.0, %v533
      %v546 = vsub.f32 0.0, %v534
      %v547 = vsub.f32 %v543, 0.005
      %v548 = vsub.f32 %v544, 0.005
      %v549 = vsub.f32 %v545, 0.005
      %v550 = vsub.f32 %v546, 0.005
      %v551 = vmax.f32 %v547, 0.0
      %v552 = vmax.f32 %v548, 0.0
      %v553 = vmax.f32 %v549, 0.0
      %v554 = vmax.f32 %v550, 0.0
      %v555 = vsub.f32 %v539, %v551
      %v556 = vsub.f32 %v540, %v552
      %v557 = vsub.f32 %v541, %v553
      %v558 = vsub.f32 %v542, %v554
      %v559 = vpack.c.bf16 %v557, %v555
      %v560 = vpack.c.bf16 %v558, %v556
      %561 = vmatprep.subr.bf16.mxu0 %v220
      %562 = vmatpush1.bf16.msra.mxu0 %v219
      %563 = vmatprep.subr.bf16.mxu0 %v218
      %564 = vmatpush1.bf16.msra.mxu0 %v217
      %565 = vmatprep.subr.bf16.mxu0 %v216
      %566 = vmatpush1.bf16.msra.mxu0 %v215
      %567 = vmatprep.subr.bf16.mxu0 %v214
      %568 = vmatpush1.bf16.msra.mxu0 %v213
      %569 = vmatprep.subr.bf16.mxu0 %v212
      %570 = vmatpush1.bf16.msra.mxu0 %v211
      %571 = vmatprep.subr.bf16.mxu0 %v210
      %572 = vmatpush1.bf16.msra.mxu0 %v209
      %573 = vmatprep.subr.bf16.mxu0 %v208
      %574 = vmatpush1.bf16.msra.mxu0 %v207
      %575 = vmatprep.subr.bf16.mxu0 %v206
      %576 = vmatpush1.bf16.msra.mxu0 %v205
      %577 = vmatprep.subr.bf16.mxu0 %v236
      %578 = vmatpush2.bf16.msra.mxu0 %v235
      %579 = vmatprep.subr.bf16.mxu0 %v234
      %580 = vmatpush2.bf16.msra.mxu0 %v233
      %581 = vmatprep.subr.bf16.mxu0 %v232
      %582 = vmatpush2.bf16.msra.mxu0 %v231
      %583 = vmatprep.subr.bf16.mxu0 %v230
      %584 = vmatpush2.bf16.msra.mxu0 %v229
      %585 = vmatprep.subr.bf16.mxu0 %v228
      %586 = vmatpush2.bf16.msra.mxu0 %v227
      %587 = vmatprep.subr.bf16.mxu0 %v226
      %588 = vmatpush2.bf16.msra.mxu0 %v225
      %589 = vmatprep.subr.bf16.mxu0 %v224
      %590 = vmatpush2.bf16.msra.mxu0 %v223
      %591 = vmatprep.subr.bf16.mxu0 %v222
      %592 = vmatpush2.bf16.msra.mxu0 %v221
      %593 = vmatprep.mubr.bf16.mxu0 %v560
      %594 = vmatmul.mubr.bf16.gmra.mxu0 %v559
      %v595 = vpop.f32.mrf.mxu0
      %v596 = vadd.f32 %v67, %v595
      %v597 = vpop.f32.mrf.mxu0
      %v598 = vadd.f32 %v68, %v597
      %v599 = vpop.f32.mrf.mxu0
      %v600 = vadd.f32 %v69, %v599
      %v601 = vpop.f32.mrf.mxu0
      %v602 = vadd.f32 %v70, %v601
      %603 = vdwg.mxu0
      %v604 = vsub.f32 %v555, %v596
      %v605 = vsub.f32 %v556, %v598
      %v606 = vsub.f32 %v557, %v600
      %v607 = vsub.f32 %v558, %v602
      %v608 = vsub.f32 %v604, 0.005
      %v609 = vsub.f32 %v605, 0.005
      %v610 = vsub.f32 %v606, 0.005
      %v611 = vsub.f32 %v607, 0.005
      %v612 = vmax.f32 %v608, 0.0
      %v613 = vmax.f32 %v609, 0.0
      %v614 = vmax.f32 %v610, 0.0
      %v615 = vmax.f32 %v611, 0.0
      %v616 = vsub.f32 0.0, %v604
      %v617 = vsub.f32 0.0, %v605
      %v618 = vsub.f32 0.0, %v606
      %v619 = vsub.f32 0.0, %v607
      %v620 = vsub.f32 %v616, 0.005
      %v621 = vsub.f32 %v617, 0.005
      %v622 = vsub.f32 %v618, 0.005
      %v623 = vsub.f32 %v619, 0.005
      %v624 = vmax.f32 %v620, 0.0
      %v625 = vmax.f32 %v621, 0.0
      %v626 = vmax.f32 %v622, 0.0
      %v627 = vmax.f32 %v623, 0.0
      %v628 = vsub.f32 %v612, %v624
      %v629 = vsub.f32 %v613, %v625
      %v630 = vsub.f32 %v614, %v626
      %v631 = vsub.f32 %v615, %v627
      %v632 = vpack.c.bf16 %v630, %v628
      %v633 = vpack.c.bf16 %v631, %v629
      %634 = vmatprep.subr.bf16.mxu0 %v220
      %635 = vmatpush1.bf16.msra.mxu0 %v219
      %636 = vmatprep.subr.bf16.mxu0 %v218
      %637 = vmatpush1.bf16.msra.mxu0 %v217
      %638 = vmatprep.subr.bf16.mxu0 %v216
      %639 = vmatpush1.bf16.msra.mxu0 %v215
      %640 = vmatprep.subr.bf16.mxu0 %v214
      %641 = vmatpush1.bf16.msra.mxu0 %v213
      %642 = vmatprep.subr.bf16.mxu0 %v212
      %643 = vmatpush1.bf16.msra.mxu0 %v211
      %644 = vmatprep.subr.bf16.mxu0 %v210
      %645 = vmatpush1.bf16.msra.mxu0 %v209
      %646 = vmatprep.subr.bf16.mxu0 %v208
      %647 = vmatpush1.bf16.msra.mxu0 %v207
      %648 = vmatprep.subr.bf16.mxu0 %v206
      %649 = vmatpush1.bf16.msra.mxu0 %v205
      %650 = vmatprep.subr.bf16.mxu0 %v236
      %651 = vmatpush2.bf16.msra.mxu0 %v235
      %652 = vmatprep.subr.bf16.mxu0 %v234
      %653 = vmatpush2.bf16.msra.mxu0 %v233
      %654 = vmatprep.subr.bf16.mxu0 %v232
      %655 = vmatpush2.bf16.msra.mxu0 %v231
      %656 = vmatprep.subr.bf16.mxu0 %v230
      %657 = vmatpush2.bf16.msra.mxu0 %v229
      %658 = vmatprep.subr.bf16.mxu0 %v228
      %659 = vmatpush2.bf16.msra.mxu0 %v227
      %660 = vmatprep.subr.bf16.mxu0 %v226
      %661 = vmatpush2.bf16.msra.mxu0 %v225
      %662 = vmatprep.subr.bf16.mxu0 %v224
      %663 = vmatpush2.bf16.msra.mxu0 %v223
      %664 = vmatprep.subr.bf16.mxu0 %v222
      %665 = vmatpush2.bf16.msra.mxu0 %v221
      %666 = vmatprep.mubr.bf16.mxu0 %v633
      %667 = vmatmul.mubr.bf16.gmra.mxu0 %v632
      %v668 = vpop.f32.mrf.mxu0
      %v669 = vadd.f32 %v67, %v668
      %v670 = vpop.f32.mrf.mxu0
      %v671 = vadd.f32 %v68, %v670
      %v672 = vpop.f32.mrf.mxu0
      %v673 = vadd.f32 %v69, %v672
      %v674 = vpop.f32.mrf.mxu0
      %v675 = vadd.f32 %v70, %v674
      %676 = vdwg.mxu0
      %v677 = vsub.f32 %v628, %v669
      %v678 = vsub.f32 %v629, %v671
      %v679 = vsub.f32 %v630, %v673
      %v680 = vsub.f32 %v631, %v675
      %v681 = vsub.f32 %v677, 0.005
      %v682 = vsub.f32 %v678, 0.005
      %v683 = vsub.f32 %v679, 0.005
      %v684 = vsub.f32 %v680, 0.005
      %v685 = vmax.f32 %v681, 0.0
      %v686 = vmax.f32 %v682, 0.0
      %v687 = vmax.f32 %v683, 0.0
      %v688 = vmax.f32 %v684, 0.0
      %v689 = vsub.f32 0.0, %v677
      %v690 = vsub.f32 0.0, %v678
      %v691 = vsub.f32 0.0, %v679
      %v692 = vsub.f32 0.0, %v680
      %v693 = vsub.f32 %v689, 0.005
      %v694 = vsub.f32 %v690, 0.005
      %v695 = vsub.f32 %v691, 0.005
      %v696 = vsub.f32 %v692, 0.005
      %v697 = vmax.f32 %v693, 0.0
      %v698 = vmax.f32 %v694, 0.0
      %v699 = vmax.f32 %v695, 0.0
      %v700 = vmax.f32 %v696, 0.0
      %v701 = vsub.f32 %v685, %v697
      %v702 = vsub.f32 %v686, %v698
      %v703 = vsub.f32 %v687, %v699
      %v704 = vsub.f32 %v688, %v700
      %v705 = vpack.c.bf16 %v703, %v701
      %v706 = vpack.c.bf16 %v704, %v702
      %707 = vmatprep.subr.bf16.mxu0 %v220
      %708 = vmatpush1.bf16.msra.mxu0 %v219
      %709 = vmatprep.subr.bf16.mxu0 %v218
      %710 = vmatpush1.bf16.msra.mxu0 %v217
      %711 = vmatprep.subr.bf16.mxu0 %v216
      %712 = vmatpush1.bf16.msra.mxu0 %v215
      %713 = vmatprep.subr.bf16.mxu0 %v214
      %714 = vmatpush1.bf16.msra.mxu0 %v213
      %715 = vmatprep.subr.bf16.mxu0 %v212
      %716 = vmatpush1.bf16.msra.mxu0 %v211
      %717 = vmatprep.subr.bf16.mxu0 %v210
      %718 = vmatpush1.bf16.msra.mxu0 %v209
      %719 = vmatprep.subr.bf16.mxu0 %v208
      %720 = vmatpush1.bf16.msra.mxu0 %v207
      %721 = vmatprep.subr.bf16.mxu0 %v206
      %722 = vmatpush1.bf16.msra.mxu0 %v205
      %723 = vmatprep.subr.bf16.mxu0 %v236
      %724 = vmatpush2.bf16.msra.mxu0 %v235
      %725 = vmatprep.subr.bf16.mxu0 %v234
      %726 = vmatpush2.bf16.msra.mxu0 %v233
      %727 = vmatprep.subr.bf16.mxu0 %v232
      %728 = vmatpush2.bf16.msra.mxu0 %v231
      %729 = vmatprep.subr.bf16.mxu0 %v230
      %730 = vmatpush2.bf16.msra.mxu0 %v229
      %731 = vmatprep.subr.bf16.mxu0 %v228
      %732 = vmatpush2.bf16.msra.mxu0 %v227
      %733 = vmatprep.subr.bf16.mxu0 %v226
      %734 = vmatpush2.bf16.msra.mxu0 %v225
      %735 = vmatprep.subr.bf16.mxu0 %v224
      %736 = vmatpush2.bf16.msra.mxu0 %v223
      %737 = vmatprep.subr.bf16.mxu0 %v222
      %738 = vmatpush2.bf16.msra.mxu0 %v221
      %739 = vmatprep.mubr.bf16.mxu0 %v706
      %740 = vmatmul.mubr.bf16.gmra.mxu0 %v705
      %v741 = vpop.f32.mrf.mxu0
      %v742 = vadd.f32 %v67, %v741
      %v743 = vpop.f32.mrf.mxu0
      %v744 = vadd.f32 %v68, %v743
      %v745 = vpop.f32.mrf.mxu0
      %v746 = vadd.f32 %v69, %v745
      %v747 = vpop.f32.mrf.mxu0
      %v748 = vadd.f32 %v70, %v747
      %749 = vdwg.mxu0
      %v750 = vsub.f32 %v701, %v742
      %v751 = vsub.f32 %v702, %v744
      %v752 = vsub.f32 %v703, %v746
      %v753 = vsub.f32 %v704, %v748
      %v754 = vsub.f32 %v750, 0.005
      %v755 = vsub.f32 %v751, 0.005
      %v756 = vsub.f32 %v752, 0.005
      %v757 = vsub.f32 %v753, 0.005
      %v758 = vmax.f32 %v754, 0.0
      %v759 = vmax.f32 %v755, 0.0
      %v760 = vmax.f32 %v756, 0.0
      %v761 = vmax.f32 %v757, 0.0
      %v762 = vsub.f32 0.0, %v750
      %v763 = vsub.f32 0.0, %v751
      %v764 = vsub.f32 0.0, %v752
      %v765 = vsub.f32 0.0, %v753
      %v766 = vsub.f32 %v762, 0.005
      %v767 = vsub.f32 %v763, 0.005
      %v768 = vsub.f32 %v764, 0.005
      %v769 = vsub.f32 %v765, 0.005
      %v770 = vmax.f32 %v766, 0.0
      %v771 = vmax.f32 %v767, 0.0
      %v772 = vmax.f32 %v768, 0.0
      %v773 = vmax.f32 %v769, 0.0
      %v774 = vsub.f32 %v758, %v770
      %v775 = vsub.f32 %v759, %v771
      %v776 = vsub.f32 %v760, %v772
      %v777 = vsub.f32 %v761, %v773
      %v778 = vpack.c.bf16 %v776, %v774
      %v779 = vpack.c.bf16 %v777, %v775
      %780 = vmatprep.subr.bf16.mxu0 %v220
      %781 = vmatpush1.bf16.msra.mxu0 %v219
      %782 = vmatprep.subr.bf16.mxu0 %v218
      %783 = vmatpush1.bf16.msra.mxu0 %v217
      %784 = vmatprep.subr.bf16.mxu0 %v216
      %785 = vmatpush1.bf16.msra.mxu0 %v215
      %786 = vmatprep.subr.bf16.mxu0 %v214
      %787 = vmatpush1.bf16.msra.mxu0 %v213
      %788 = vmatprep.subr.bf16.mxu0 %v212
      %789 = vmatpush1.bf16.msra.mxu0 %v211
      %790 = vmatprep.subr.bf16.mxu0 %v210
      %791 = vmatpush1.bf16.msra.mxu0 %v209
      %792 = vmatprep.subr.bf16.mxu0 %v208
      %793 = vmatpush1.bf16.msra.mxu0 %v207
      %794 = vmatprep.subr.bf16.mxu0 %v206
      %795 = vmatpush1.bf16.msra.mxu0 %v205
      %796 = vmatprep.subr.bf16.mxu0 %v236
      %797 = vmatpush2.bf16.msra.mxu0 %v235
      %798 = vmatprep.subr.bf16.mxu0 %v234
      %799 = vmatpush2.bf16.msra.mxu0 %v233
      %800 = vmatprep.subr.bf16.mxu0 %v232
      %801 = vmatpush2.bf16.msra.mxu0 %v231
      %802 = vmatprep.subr.bf16.mxu0 %v230
      %803 = vmatpush2.bf16.msra.mxu0 %v229
      %804 = vmatprep.subr.bf16.mxu0 %v228
      %805 = vmatpush2.bf16.msra.mxu0 %v227
      %806 = vmatprep.subr.bf16.mxu0 %v226
      %807 = vmatpush2.bf16.msra.mxu0 %v225
      %808 = vmatprep.subr.bf16.mxu0 %v224
      %809 = vmatpush2.bf16.msra.mxu0 %v223
      %810 = vmatprep.subr.bf16.mxu0 %v222
      %811 = vmatpush2.bf16.msra.mxu0 %v221
      %812 = vmatprep.mubr.bf16.mxu0 %v779
      %813 = vmatmul.mubr.bf16.gmra.mxu0 %v778
      %v814 = vpop.f32.mrf.mxu0
      %v815 = vadd.f32 %v67, %v814
      %v816 = vpop.f32.mrf.mxu0
      %v817 = vadd.f32 %v68, %v816
      %v818 = vpop.f32.mrf.mxu0
      %v819 = vadd.f32 %v69, %v818
      %v820 = vpop.f32.mrf.mxu0
      %v821 = vadd.f32 %v70, %v820
      %822 = vdwg.mxu0
      %v823 = vsub.f32 %v774, %v815
      %v824 = vsub.f32 %v775, %v817
      %v825 = vsub.f32 %v776, %v819
      %v826 = vsub.f32 %v777, %v821
      %v827 = vsub.f32 %v823, 0.005
      %v828 = vsub.f32 %v824, 0.005
      %v829 = vsub.f32 %v825, 0.005
      %v830 = vsub.f32 %v826, 0.005
      %v831 = vmax.f32 %v827, 0.0
      %v832 = vmax.f32 %v828, 0.0
      %v833 = vmax.f32 %v829, 0.0
      %v834 = vmax.f32 %v830, 0.0
      %v835 = vsub.f32 0.0, %v823
      %v836 = vsub.f32 0.0, %v824
      %v837 = vsub.f32 0.0, %v825
      %v838 = vsub.f32 0.0, %v826
      %v839 = vsub.f32 %v835, 0.005
      %v840 = vsub.f32 %v836, 0.005
      %v841 = vsub.f32 %v837, 0.005
      %v842 = vsub.f32 %v838, 0.005
      %v843 = vmax.f32 %v839, 0.0
      %v844 = vmax.f32 %v840, 0.0
      %v845 = vmax.f32 %v841, 0.0
      %v846 = vmax.f32 %v842, 0.0
      %v847 = vsub.f32 %v831, %v843
      %v848 = vsub.f32 %v832, %v844
      %v849 = vsub.f32 %v833, %v845
      %v850 = vsub.f32 %v834, %v846
      %v851 = vsub.f32 %v847, %v774
      %v852 = vsub.f32 %v848, %v775
      %v853 = vsub.f32 %v849, %v776
      %v854 = vsub.f32 %v850, %v777
      %v855 = vmul.f32 %v851, %v851
      %v856 = vmul.f32 %v852, %v852
      %v857 = vmul.f32 %v853, %v853
      %v858 = vmul.f32 %v854, %v854
      %v859 = vadd.f32 %v855, %v856
      %v860 = vadd.f32 %v859, %v857
      %v861 = vadd.f32 %v860, %v858
      %862 = vadd.xlane.f32.xlu0 %v861
      %v863 = vpop.xlane.xlu0 %862
      %v864 = vrot.slane %v863, 4
      %v865 = vadd.f32 %v863, %v864
      %v866 = vrot.slane %v865, 2
      %v867 = vadd.f32 %v865, %v866
      %v868 = vrot.slane %v867, 1
      %v869 = vadd.f32 %v867, %v868
      %s870 = vtos %v869
      %v871 = vmul.f32 %v774, %v774
      %v872 = vmul.f32 %v775, %v775
      %v873 = vmul.f32 %v776, %v776
      %v874 = vmul.f32 %v777, %v777
      %v875 = vadd.f32 %v871, %v872
      %v876 = vadd.f32 %v875, %v873
      %v877 = vadd.f32 %v876, %v874
      %878 = vadd.xlane.f32.xlu0 %v877
      %v879 = vpop.xlane.xlu0 %878
      %v880 = vrot.slane %v879, 4
      %v881 = vadd.f32 %v879, %v880
      %v882 = vrot.slane %v881, 2
      %v883 = vadd.f32 %v881, %v882
      %v884 = vrot.slane %v883, 1
      %v885 = vadd.f32 %v883, %v884
      %s886 = vtos %v885
      %s887 = smul.f32 %s886, 0.0001
      %p888 = scmp.lt.f32.partialorder %s870, %s887
      %p889 = scmp.eq.f32.partialorder %s886, 0.0
      %p890 = scmp.eq.f32.partialorder %s870, 0.0
      %p891 = pnand %p889, %p890
      %p892 = pneg %p891
      %p893 = por %p888, %p892
      %894 = vst [vmem:[#allocation2] sm:$0xff] %v847
      %895 = vst [vmem:[#allocation2 + $0x8] sm:$0xff] %v848
      %896 = vst [vmem:[#allocation2 + $0x10] sm:$0xff] %v849
      %897 = vst [vmem:[#allocation2 + $0x18] sm:$0xff] %v850
      %s898 = scalar_select %p893, 1, 0
      %899 = sst [smem:[%s54]] %s898
    $region28: #{sparse_net_forward.1} parent=21 // pred_fallthru
      _
  $region22: #{sparse_net_forward.1} parent=0 // loop_footer
    %s61 = sadd.s32 1, %s57
  $region23: #{sparse_net_forward.1} parent=0 // loop_footer_branch
    %56 = sbr.rel target = $region19
  $region24: #{sparse_net_forward.1} parent=0 // loop_exit
    _
  %v900 = vld [vmem:[#allocation2] sm:$0xff]
  %v901 = vld [vmem:[#allocation2 + $0x8] sm:$0xff]
  %v902 = vld [vmem:[#allocation2 + $0x10] sm:$0xff]
  %v903 = vld [vmem:[#allocation2 + $0x18] sm:$0xff]
  %v904 = vpack.c.bf16 %v902, %v900
  %v905 = vpack.c.bf16 %v903, %v901
  %v906 = vld [vmem:[%s2] sm:$0xf]
  %v907 = vld [vmem:[%s2 + $0x4] sm:$0xf]
  %v908 = vld [vmem:[%s2 + $0x8] sm:$0xf]
  %v909 = vld [vmem:[%s2 + $0xc] sm:$0xf]
  %v910 = vld [vmem:[%s2 + $0x10] sm:$0xf]
  %v911 = vld [vmem:[%s2 + $0x14] sm:$0xf]
  %v912 = vld [vmem:[%s2 + $0x18] sm:$0xf]
  %v913 = vld [vmem:[%s2 + $0x1c] sm:$0xf]
  %v914 = vld [vmem:[%s2 + $0x20] sm:$0xf]
  %v915 = vld [vmem:[%s2 + $0x24] sm:$0xf]
  %v916 = vld [vmem:[%s2 + $0x28] sm:$0xf]
  %v917 = vld [vmem:[%s2 + $0x2c] sm:$0xf]
  %v918 = vld [vmem:[%s2 + $0x30] sm:$0xf]
  %v919 = vld [vmem:[%s2 + $0x34] sm:$0xf]
  %v920 = vld [vmem:[%s2 + $0x38] sm:$0xf]
  %v921 = vld [vmem:[%s2 + $0x3c] sm:$0xf]
  %v922 = vld [vmem:[%s2 + $0x40] sm:$0xf]
  %v923 = vld [vmem:[%s2 + $0x44] sm:$0xf]
  %v924 = vld [vmem:[%s2 + $0x48] sm:$0xf]
  %v925 = vld [vmem:[%s2 + $0x4c] sm:$0xf]
  %v926 = vld [vmem:[%s2 + $0x50] sm:$0xf]
  %v927 = vld [vmem:[%s2 + $0x54] sm:$0xf]
  %v928 = vld [vmem:[%s2 + $0x58] sm:$0xf]
  %v929 = vld [vmem:[%s2 + $0x5c] sm:$0xf]
  %v930 = vld [vmem:[%s2 + $0x60] sm:$0xf]
  %v931 = vld [vmem:[%s2 + $0x64] sm:$0xf]
  %v932 = vld [vmem:[%s2 + $0x68] sm:$0xf]
  %v933 = vld [vmem:[%s2 + $0x6c] sm:$0xf]
  %v934 = vld [vmem:[%s2 + $0x70] sm:$0xf]
  %v935 = vld [vmem:[%s2 + $0x74] sm:$0xf]
  %v936 = vld [vmem:[%s2 + $0x78] sm:$0xf]
  %v937 = vld [vmem:[%s2 + $0x7c] sm:$0xf]
  %v938 = vld [vmem:[%s3] sm:$0x1]
  %v940 = vlaneseq
  %v941 = vshrl.u32 %v940, 7
  %v942 = vsub.s32 0, %v941
  %v943 = vrot.slane %v938, %v942
  %v977 = vunpack.c.l.b16 %v906
  %v978 = vunpack.c.l.b16 %v907
  %v979 = vunpack.c.l.b16 %v908
  %v980 = vunpack.c.l.b16 %v909
  %v981 = vunpack.c.l.b16 %v910
  %v982 = vunpack.c.l.b16 %v911
  %v983 = vunpack.c.l.b16 %v912
  %v984 = vunpack.c.l.b16 %v913
  %v985 = vunpack.c.l.b16 %v914
  %v986 = vunpack.c.l.b16 %v915
  %v987 = vunpack.c.l.b16 %v916
  %v988 = vunpack.c.l.b16 %v917
  %v989 = vunpack.c.l.b16 %v918
  %v990 = vunpack.c.l.b16 %v919
  %v991 = vunpack.c.l.b16 %v920
  %v992 = vunpack.c.l.b16 %v921
  %v993 = vunpack.c.l.b16 %v922
  %v994 = vunpack.c.l.b16 %v923
  %v995 = vunpack.c.l.b16 %v924
  %v996 = vunpack.c.l.b16 %v925
  %v997 = vunpack.c.l.b16 %v926
  %v998 = vunpack.c.l.b16 %v927
  %v999 = vunpack.c.l.b16 %v928
  %v1000 = vunpack.c.l.b16 %v929
  %v1001 = vunpack.c.l.b16 %v930
  %v1002 = vunpack.c.l.b16 %v931
  %v1003 = vunpack.c.l.b16 %v932
  %v1004 = vunpack.c.l.b16 %v933
  %v1005 = vunpack.c.l.b16 %v934
  %v1006 = vunpack.c.l.b16 %v935
  %v1007 = vunpack.c.l.b16 %v936
  %v1008 = vunpack.c.l.b16 %v937
  %v1009 = vpack.c.b16 %v978, %v977
  %v1010 = vpack.c.b16 %v980, %v979
  %v1011 = vpack.c.b16 %v982, %v981
  %v1012 = vpack.c.b16 %v984, %v983
  %v1013 = vpack.c.b16 %v986, %v985
  %v1014 = vpack.c.b16 %v988, %v987
  %v1015 = vpack.c.b16 %v990, %v989
  %v1016 = vpack.c.b16 %v992, %v991
  %v1017 = vpack.c.b16 %v994, %v993
  %v1018 = vpack.c.b16 %v996, %v995
  %v1019 = vpack.c.b16 %v998, %v997
  %v1020 = vpack.c.b16 %v1000, %v999
  %v1021 = vpack.c.b16 %v1002, %v1001
  %v1022 = vpack.c.b16 %v1004, %v1003
  %v1023 = vpack.c.b16 %v1006, %v1005
  %v1024 = vpack.c.b16 %v1008, %v1007
  %1041 = vmatprep.subr.bf16.mxu0 0
  %1042 = vmatpush1.bf16.msra.mxu0 %v1016
  %1043 = vmatprep.subr.bf16.mxu0 0
  %1044 = vmatpush1.bf16.msra.mxu0 %v1015
  %1045 = vmatprep.subr.bf16.mxu0 0
  %1046 = vmatpush1.bf16.msra.mxu0 %v1014
  %1047 = vmatprep.subr.bf16.mxu0 0
  %1048 = vmatpush1.bf16.msra.mxu0 %v1013
  %1049 = vmatprep.subr.bf16.mxu0 0
  %1050 = vmatpush1.bf16.msra.mxu0 %v1012
  %1051 = vmatprep.subr.bf16.mxu0 0
  %1052 = vmatpush1.bf16.msra.mxu0 %v1011
  %1053 = vmatprep.subr.bf16.mxu0 0
  %1054 = vmatpush1.bf16.msra.mxu0 %v1010
  %1055 = vmatprep.subr.bf16.mxu0 0
  %1056 = vmatpush1.bf16.msra.mxu0 %v1009
  %1057 = vmatprep.subr.bf16.mxu0 0
  %1058 = vmatpush2.bf16.msra.mxu0 %v1024
  %1059 = vmatprep.subr.bf16.mxu0 0
  %1060 = vmatpush2.bf16.msra.mxu0 %v1023
  %1061 = vmatprep.subr.bf16.mxu0 0
  %1062 = vmatpush2.bf16.msra.mxu0 %v1022
  %1063 = vmatprep.subr.bf16.mxu0 0
  %1064 = vmatpush2.bf16.msra.mxu0 %v1021
  %1065 = vmatprep.subr.bf16.mxu0 0
  %1066 = vmatpush2.bf16.msra.mxu0 %v1020
  %1067 = vmatprep.subr.bf16.mxu0 0
  %1068 = vmatpush2.bf16.msra.mxu0 %v1019
  %1069 = vmatprep.subr.bf16.mxu0 0
  %1070 = vmatpush2.bf16.msra.mxu0 %v1018
  %1071 = vmatprep.subr.bf16.mxu0 0
  %1072 = vmatpush2.bf16.msra.mxu0 %v1017
  %1073 = vmatprep.mubr.bf16.mxu0 %v905
  %1074 = vmatmul.mubr.bf16.gmra.mxu0 %v904
  %v1075 = vpop.f32.mrf.mxu0
  %v1076 = vadd.f32 %v943, %v1075
  %v1077 = vpop.f32.mrf.mxu0
  %v1078 = vpop.f32.mrf.mxu0
  %v1079 = vadd.f32 %v943, %v1078
  %v1080 = vpop.f32.mrf.mxu0
  %1081 = vdwg.mxu0
  %vm1082 = vcmask 523264
  %1083 = vst.msk [vmem:[%s4] sm:$0xff] %vm1082, %v1076
  %1084 = vst.msk [vmem:[%s4 + $0x8] sm:$0xff] %vm1082, %v1079
  // Predicated region
  $region29: #{sparse_net_forward.1} parent=0 // pred_check
    _
  $region30: #{sparse_net_forward.1} parent=0 // pred_check_branch
    %1086 = sbr.rel (0) target = $region32
  $region31: #{sparse_net_forward.1} parent=0 // pred_region
    _
  $region32: #{sparse_net_forward.1} parent=0 // pred_fallthru
    _
  // Predicated region
  $region33: #{sparse_net_forward.1} parent=0 // pred_check
    _
  $region34: #{sparse_net_forward.1} parent=0 // pred_check_branch
    %1088 = sbr.rel (0) target = $region36
  $region35: #{sparse_net_forward.1} parent=0 // pred_region
    _
  $region36: #{sparse_net_forward.1} parent=0 // pred_fallthru
    _

</llo_original>
